<compile_context>
chip_gen: v6e
topology: v6e:2x2x1
jax: 0.10.0
libtpu: 0.0.40
codegen_flags: <defaults>
</compile_context>

<pallas_src>
import functools

import numpy as np
import jax
import jax.numpy as jnp
from jax import lax
from jax.experimental import pallas as pl
from jax.experimental.pallas import tpu as pltpu

LANES = 128


# ---------------- fused Pallas kernel ----------------

def fused_dqn_kernel(af_ref, bf_ref, wc1_ref, bc1_ref, wc2_ref, bc2_ref,
                     w1_ref, b1_ref, w2_ref, b2_ref, o_ref):
    # conv1 / conv2: one matmul each against the prebuilt dense conv matrix.
    # Output layout is directly (n, oc*P + p) == torch's view(-1, OC*P).
    za = jnp.maximum(
        jnp.dot(af_ref[...], wc1_ref[...], preferred_element_type=jnp.float32)
        + bc1_ref[...], 0.0)                                   # (N, OC*Pa) = (2, 128)
    zb = jnp.maximum(
        jnp.dot(bf_ref[...], wc2_ref[...], preferred_element_type=jnp.float32)
        + bc2_ref[...], 0.0)                                   # (N, OC*Pb) = (2, 32)

    # torch.cat((alpha, beta), 1): cheap lane concat of two vreg-resident tiles.
    x = jnp.concatenate([za, zb], axis=1)                      # (N, 160)

    # f1 + ReLU: single batched dot over all samples.
    h = jnp.maximum(
        jnp.dot(x, w1_ref[...], preferred_element_type=jnp.float32)
        + b1_ref[...], 0.0)                                    # (N, 256)

    # f2: single batched dot, lane-dense (128-wide padded) store.
    o_ref[...] = (jnp.dot(h, w2_ref[...], preferred_element_type=jnp.float32)
                  + b2_ref[...])                               # (N, 128)


# ---------------- one-time parameter preparation ----------------

def conv_to_dense(w, H, W):
    """Dense matrix of a VALID, stride-1 conv (cross-correlation, torch/lax).

    w: (OC, C, K, K).  Returns M of shape (C*H*W, OC*OH*OW) such that
      (x.reshape(N, C*H*W) @ M)[n, oc*OH*OW + oh*OW + ow] == conv(x, w)[n, oc, oh, ow]
    i.e. the matmul output is already in torch's (OC, OH, OW) flatten order.
    """
    OC, C, K, _ = w.shape
    OH, OW = H - K + 1, W - K + 1
    M = np.zeros((C, H, W, OC, OH, OW), np.float32)
    for kh in range(K):
        for kw in range(K):
            for oh in range(OH):
                for ow in range(OW):
                    M[:, oh + kh, ow + kw, :, oh, ow] = w[:, :, kh, kw].T
    return M.reshape(C * H * W, OC * OH * OW)


def prepare_params(params, Ha, Wa, Hb, Wb):
    """Build all static kernel operands ONCE (outside the per-step path)."""
    c1_w = np.asarray(params['c1_w'], np.float32)
    c2_w = np.asarray(params['c2_w'], np.float32)
    OC = c1_w.shape[0]

    wc1 = conv_to_dense(c1_w, Ha, Wa)                 # (Cin*Ha*Wa, OC*Pa)
    wc2 = conv_to_dense(c2_w, Hb, Wb)                 # (Cin*Hb*Wb, OC*Pb)
    Fa, Fb = wc1.shape[1], wc2.shape[1]
    Pa, Pb = Fa // OC, Fb // OC

    # lane-dense bias rows: bc[0, oc*P + p] = conv_bias[oc]
    bc1 = np.repeat(np.asarray(params['c1_b'], np.float32), Pa)[None, :]
    bc2 = np.repeat(np.asarray(params['c2_b'], np.float32), Pb)[None, :]

    f1_w = np.asarray(params['f1_w'], np.float32)
    f1_b = np.asarray(params['f1_b'], np.float32).reshape(1, -1)
    assert f1_w.shape[0] == Fa + Fb, (
        "f1 in_features must equal OC*(conv1 out spatial) + OC*(conv2 out "
        "spatial); requires input spatial = 2*state_dim - 1.")
    Hdim = f1_w.shape[1]

    f2_w = np.asarray(params['f2_w'], np.float32)
    f2_b = np.asarray(params['f2_b'], np.float32).reshape(1, -1)
    A = f2_w.shape[1]
    A_pad = max(LANES, ((A + LANES - 1) // LANES) * LANES)
    w2p = np.zeros((Hdim, A_pad), np.float32)
    w2p[:, :A] = f2_w
    b2p = np.zeros((1, A_pad), np.float32)
    b2p[:, :A] = f2_b

    prep = {
        'wc1': jnp.asarray(wc1), 'bc1': jnp.asarray(bc1),
        'wc2': jnp.asarray(wc2), 'bc2': jnp.asarray(bc2),
        'f1_w': jnp.asarray(f1_w), 'f1_b': jnp.asarray(f1_b),
        'w2p': jnp.asarray(w2p), 'b2p': jnp.asarray(b2p),
    }
    return prep, A


# ---------------- per-call forward ----------------

@functools.partial(jax.jit, static_argnames=("A",))
def dqn_full_forward(prep, alpha, beta, *, A):
    N = alpha.shape[0]
    af = alpha.reshape(N, -1)          # (N, Cin*Ha*Wa)  -- layout-free reshape
    bf = beta.reshape(N, -1)           # (N, Cin*Hb*Wb)
    A_pad = prep['w2p'].shape[1]

    out = pl.pallas_call(
        fused_dqn_kernel,
        out_shape=jax.ShapeDtypeStruct((N, A_pad), jnp.float32),
        in_specs=[pl.BlockSpec(memory_space=pltpu.MemorySpace.VMEM)] * 10,
        out_specs=pl.BlockSpec(memory_space=pltpu.MemorySpace.VMEM),
    )(af, bf, prep['wc1'], prep['bc1'], prep['wc2'], prep['bc2'],
      prep['f1_w'], prep['f1_b'], prep['w2p'], prep['b2p'])
    return out[:, :A]


# ---------------- pure-JAX reference ----------------

def ref_forward(params, alpha, beta):
    def conv(x, w, b):
        y = lax.conv_general_dilated(x, w, (1, 1), 'VALID',
                                     dimension_numbers=('NCHW', 'OIHW', 'NCHW'))
        return jnp.maximum(y + b.reshape(1, -1, 1, 1), 0.0)
    N = alpha.shape[0]
    a = conv(alpha, params['c1_w'], params['c1_b']).reshape(N, -1)
    b = conv(beta, params['c2_w'], params['c2_b']).reshape(N, -1)
    x = jnp.concatenate([a, b], axis=1)
    h = jnp.maximum(x @ params['f1_w'] + params['f1_b'], 0.0)
    return h @ params['f2_w'] + params['f2_b']


# ---------------- main ----------------

if __name__ == "__main__":
    # module hyperparameters (small, consistent with the forward pass)
    batch_size = 2        # N and conv out_channels (as in the module)
    history_length = 4    # conv in_channels
    action_length = 6
    state_alpha_dim = 8   # conv1 kernel size == conv1 output spatial dim
    state_beta_dim = 4    # conv2 kernel size == conv2 output spatial dim

    N = batch_size
    Ha = 2 * state_alpha_dim - 1    # so conv1 output is sa x sa
    Hb = 2 * state_beta_dim - 1     # so conv2 output is sb x sb
    f1_in = (batch_size * state_alpha_dim * state_alpha_dim
             + batch_size * state_beta_dim * state_beta_dim)

    key = jax.random.PRNGKey(0)
    ks = jax.random.split(key, 10)
    params = {
        'c1_w': 0.05 * jax.random.normal(ks[0], (batch_size, history_length,
                                                 state_alpha_dim, state_alpha_dim), jnp.float32),
        'c1_b': 0.05 * jax.random.normal(ks[1], (batch_size,), jnp.float32),
        'c2_w': 0.05 * jax.random.normal(ks[2], (batch_size, history_length,
                                                 state_beta_dim, state_beta_dim), jnp.float32),
        'c2_b': 0.05 * jax.random.normal(ks[3], (batch_size,), jnp.float32),
        'f1_w': 0.05 * jax.random.normal(ks[4], (f1_in, 256), jnp.float32),
        'f1_b': 0.05 * jax.random.normal(ks[5], (1, 256), jnp.float32),
        'f2_w': 0.05 * jax.random.normal(ks[6], (256, action_length), jnp.float32),
        'f2_b': 0.05 * jax.random.normal(ks[7], (1, action_length), jnp.float32),
    }

    alpha = jax.random.normal(ks[8], (N, history_length, Ha, Ha), jnp.float32)
    beta = jax.random.normal(ks[9], (N, history_length, Hb, Hb), jnp.float32)

    # one-time param prep (dense conv matrices, lane-dense biases, padded f2)
    prep, A = prepare_params(params, Ha, Ha, Hb, Hb)

    out = jax.block_until_ready(dqn_full_forward(prep, alpha, beta, A=A))
    ref = jax.block_until_ready(ref_forward(params, alpha, beta))

    assert out.shape == (N, action_length), out.shape
    assert jnp.allclose(out, ref, atol=1e-4, rtol=1e-4), (out, ref)
    print("KERNEL_OK")
</pallas_src>

<mosaic_0001>
module attributes {stable_mosaic.version = 11 : i64} {
  func.func @fused_dqn_kernel(%arg0: memref<2x900xf32, #tpu.memory_space<vmem>>, %arg1: memref<2x196xf32, #tpu.memory_space<vmem>>, %arg2: memref<900x128xf32, #tpu.memory_space<vmem>>, %arg3: memref<1x128xf32, #tpu.memory_space<vmem>>, %arg4: memref<196x32xf32, #tpu.memory_space<vmem>>, %arg5: memref<1x32xf32, #tpu.memory_space<vmem>>, %arg6: memref<160x256xf32, #tpu.memory_space<vmem>>, %arg7: memref<1x256xf32, #tpu.memory_space<vmem>>, %arg8: memref<256x128xf32, #tpu.memory_space<vmem>>, %arg9: memref<1x128xf32, #tpu.memory_space<vmem>>, %arg10: memref<2x128xf32, #tpu.memory_space<vmem>>) attributes {dimension_semantics = [], scalar_prefetch = 0 : i64, scratch_operands = 0 : i64, tpu.core_type = #tpu.core_type<tc>} {
    %c0 = arith.constant 0 : index
    %c0_0 = arith.constant 0 : index
    %0 = vector.load %arg0[%c0, %c0_0] : memref<2x900xf32, #tpu.memory_space<vmem>>, vector<2x900xf32>
    %c0_1 = arith.constant 0 : index
    %c0_2 = arith.constant 0 : index
    %1 = vector.load %arg2[%c0_1, %c0_2] : memref<900x128xf32, #tpu.memory_space<vmem>>, vector<900x128xf32>
    %cst = arith.constant dense<0.000000e+00> : vector<2x128xf32>
    %2 = tpu.matmul %0, %1, %cst {dimension_numbers = #tpu.dot_dimension_numbers<[1], [0], [0], [1], [0, 0, 1, 1], [], []>} : vector<2x900xf32>, vector<900x128xf32>, vector<2x128xf32> -> vector<2x128xf32>
    %c0_3 = arith.constant 0 : index
    %c0_4 = arith.constant 0 : index
    %3 = vector.load %arg3[%c0_3, %c0_4] : memref<1x128xf32, #tpu.memory_space<vmem>>, vector<1x128xf32>
    %4 = vector.broadcast %3 : vector<1x128xf32> to vector<2x128xf32>
    %5 = arith.addf %2, %4 : vector<2x128xf32>
    %cst_5 = arith.constant 0.000000e+00 : f32
    %6 = vector.broadcast %cst_5 : f32 to vector<2x128xf32>
    %7 = arith.maximumf %5, %6 : vector<2x128xf32>
    %c0_6 = arith.constant 0 : index
    %c0_7 = arith.constant 0 : index
    %8 = vector.load %arg1[%c0_6, %c0_7] : memref<2x196xf32, #tpu.memory_space<vmem>>, vector<2x196xf32>
    %c0_8 = arith.constant 0 : index
    %c0_9 = arith.constant 0 : index
    %9 = vector.load %arg4[%c0_8, %c0_9] : memref<196x32xf32, #tpu.memory_space<vmem>>, vector<196x32xf32>
    %cst_10 = arith.constant dense<0.000000e+00> : vector<2x32xf32>
    %10 = tpu.matmul %8, %9, %cst_10 {dimension_numbers = #tpu.dot_dimension_numbers<[1], [0], [0], [1], [0, 0, 1, 1], [], []>} : vector<2x196xf32>, vector<196x32xf32>, vector<2x32xf32> -> vector<2x32xf32>
    %c0_11 = arith.constant 0 : index
    %c0_12 = arith.constant 0 : index
    %11 = vector.load %arg5[%c0_11, %c0_12] : memref<1x32xf32, #tpu.memory_space<vmem>>, vector<1x32xf32>
    %12 = vector.broadcast %11 : vector<1x32xf32> to vector<2x32xf32>
    %13 = arith.addf %10, %12 : vector<2x32xf32>
    %cst_13 = arith.constant 0.000000e+00 : f32
    %14 = vector.broadcast %cst_13 : f32 to vector<2x32xf32>
    %15 = arith.maximumf %13, %14 : vector<2x32xf32>
    %16 = tpu.concatenate %7, %15 in 1 : vector<2x128xf32>, vector<2x32xf32> -> vector<2x160xf32>
    %c0_14 = arith.constant 0 : index
    %c0_15 = arith.constant 0 : index
    %17 = vector.load %arg6[%c0_14, %c0_15] : memref<160x256xf32, #tpu.memory_space<vmem>>, vector<160x256xf32>
    %cst_16 = arith.constant dense<0.000000e+00> : vector<2x256xf32>
    %18 = tpu.matmul %16, %17, %cst_16 {dimension_numbers = #tpu.dot_dimension_numbers<[1], [0], [0], [1], [0, 0, 1, 1], [], []>} : vector<2x160xf32>, vector<160x256xf32>, vector<2x256xf32> -> vector<2x256xf32>
    %c0_17 = arith.constant 0 : index
    %c0_18 = arith.constant 0 : index
    %19 = vector.load %arg7[%c0_17, %c0_18] : memref<1x256xf32, #tpu.memory_space<vmem>>, vector<1x256xf32>
    %20 = vector.broadcast %19 : vector<1x256xf32> to vector<2x256xf32>
    %21 = arith.addf %18, %20 : vector<2x256xf32>
    %cst_19 = arith.constant 0.000000e+00 : f32
    %22 = vector.broadcast %cst_19 : f32 to vector<2x256xf32>
    %23 = arith.maximumf %21, %22 : vector<2x256xf32>
    %c0_20 = arith.constant 0 : index
    %c0_21 = arith.constant 0 : index
    %24 = vector.load %arg8[%c0_20, %c0_21] : memref<256x128xf32, #tpu.memory_space<vmem>>, vector<256x128xf32>
    %cst_22 = arith.constant dense<0.000000e+00> : vector<2x128xf32>
    %25 = tpu.matmul %23, %24, %cst_22 {dimension_numbers = #tpu.dot_dimension_numbers<[1], [0], [0], [1], [0, 0, 1, 1], [], []>} : vector<2x256xf32>, vector<256x128xf32>, vector<2x128xf32> -> vector<2x128xf32>
    %c0_23 = arith.constant 0 : index
    %c0_24 = arith.constant 0 : index
    %26 = vector.load %arg9[%c0_23, %c0_24] : memref<1x128xf32, #tpu.memory_space<vmem>>, vector<1x128xf32>
    %27 = vector.broadcast %26 : vector<1x128xf32> to vector<2x128xf32>
    %28 = arith.addf %25, %27 : vector<2x128xf32>
    %c0_25 = arith.constant 0 : index
    %c0_26 = arith.constant 0 : index
    %29 = vector.load %arg10[%c0_25, %c0_26] : memref<2x128xf32, #tpu.memory_space<vmem>>, vector<2x128xf32>
    tpu.vector_store %arg10[%c0_25, %c0_26], %28 {strides = array<i32>} : memref<2x128xf32, #tpu.memory_space<vmem>>, vector<2x128xf32>,
    return
  }
}

</mosaic_0001>

<llo_original>
// kernel: dqn_full_forward.1
$region0: #{dqn_full_forward.1}
  #allocation0 [shape = 'u32[]', space=smem, size = 0x4, offset = 0x4, fixed_abs, tag = 'smem constant byte address 0x4 - core index']
  #allocation1 [shape = 'u32[144,128]{1,0:T(1,128)}', space=vmem, size = 0x12000, scoped, tag = 'internal scratch']
  %s0 = inlined_call_operand.vmem [shape: f32[2,900], index: 0, kind: input, shape index: {}]
  %s1 = inlined_call_operand.vmem [shape: f32[2,196], index: 1, kind: input, shape index: {}]
  %s2 = inlined_call_operand.hbm [shape: f32[900,128], index: 2, kind: input, shape index: {}]
  %s3 = inlined_call_operand.vmem [shape: f32[1,128], index: 3, kind: input, shape index: {}]
  %s4 = inlined_call_operand.vmem [shape: f32[196,32], index: 4, kind: input, shape index: {}]
  %s5 = inlined_call_operand.vmem [shape: f32[1,32], index: 5, kind: input, shape index: {}]
  %s6 = inlined_call_operand.vmem [shape: f32[160,256], index: 6, kind: input, shape index: {}]
  %s7 = inlined_call_operand.vmem [shape: f32[1,256], index: 7, kind: input, shape index: {}]
  %s8 = inlined_call_operand.vmem [shape: f32[256,128], index: 8, kind: input, shape index: {}]
  %s9 = inlined_call_operand.vmem [shape: f32[1,128], index: 9, kind: input, shape index: {}]
  %s10 = inlined_call_operand.hbm [shape: f32[2,128], index: 10, kind: output, shape index: {}]
  %s11 = sld [smem:[#allocation0]]
  $region54: #{dqn_full_forward.1} parent=0
    _
  %s13 = ssub.s32 1, %s11
  %s14 = scalar_select 0, %s13, %s11
  $region1: #{dqn_full_forward.1} parent=0
    #allocation2 [shape = 'u8[462848]{0}', space=vmem, size = 0x71000, scoped, tag = 'input window, operand 2, single buffered']
    #allocation3 [shape = 's32[1]{0}', space=sflag, size = 0x4, scoped, tag = 'scoped memory for dqn_full_forward.1']
    #allocation4 [shape = 's32[1]{0}', space=sflag, size = 0x4, scoped, tag = 'scoped memory for dqn_full_forward.1']
    #allocation5 [shape = 'u8[1024]{0}', space=vmem, size = 0x400, scoped, tag = 'output window, operand 0, single buffered']
    %15 = vsyncpa [#allocation3], 0
    %16 = vsyncpa [#allocation4], 0
    // Predicated region
    $region2: #{dqn_full_forward.1} parent=1 // pred_check
      _
    $region3: #{dqn_full_forward.1} parent=1 // pred_check_branch
      %18 = sbr.rel (0) target = $region5
    $region4: #{dqn_full_forward.1} parent=1 // pred_region
      _
    $region5: #{dqn_full_forward.1} parent=1 // pred_fallthru
      _
    // Predicated region
    $region6: #{dqn_full_forward.1} parent=1 // pred_check
      _
    $region7: #{dqn_full_forward.1} parent=1 // pred_check_branch
      %20 = sbr.rel (0) target = $region9
    $region8: #{dqn_full_forward.1} parent=1 // pred_region
      _
    $region9: #{dqn_full_forward.1} parent=1 // pred_fallthru
      _
    // Predicated region
    $region10: #{dqn_full_forward.1} parent=1 // pred_check
      _
    $region11: #{dqn_full_forward.1} parent=1 // pred_check_branch
      %22 = sbr.rel (0) target = $region13
    $region12: #{dqn_full_forward.1} parent=1 // pred_region
      %s24 = ssub.s32 14464, 14464
      %25 = vsyncadd [#allocation3], %s24
      %s26 = sshll.u32 [#allocation2], 4
      %s27 = int_to_ptr.vmem [resolvable:$true] %s26
      %32 = dma.hbm_to_vmem [thread:$0]  %s2, 14464, %s27, [#allocation3], 128, 128, 8
    $region13: #{dqn_full_forward.1} parent=1 // pred_fallthru
      _
    // Predicated region
    $region14: #{dqn_full_forward.1} parent=1 // pred_check
      _
    $region15: #{dqn_full_forward.1} parent=1 // pred_check_branch
      %34 = sbr.rel (0) target = $region17
    $region16: #{dqn_full_forward.1} parent=1 // pred_region
      _
    $region17: #{dqn_full_forward.1} parent=1 // pred_fallthru
      _
    // Predicated region
    $region18: #{dqn_full_forward.1} parent=1 // pred_check
      _
    $region19: #{dqn_full_forward.1} parent=1 // pred_check_branch
      %36 = sbr.rel (0) target = $region21
    $region20: #{dqn_full_forward.1} parent=1 // pred_region
      _
    $region21: #{dqn_full_forward.1} parent=1 // pred_fallthru
      _
    // Predicated region
    $region22: #{dqn_full_forward.1} parent=1 // pred_check
      _
    $region23: #{dqn_full_forward.1} parent=1 // pred_check_branch
      %38 = sbr.rel (0) target = $region25
    $region24: #{dqn_full_forward.1} parent=1 // pred_region
      _
    $region25: #{dqn_full_forward.1} parent=1 // pred_fallthru
      _
    // Predicated region
    $region26: #{dqn_full_forward.1} parent=1 // pred_check
      _
    $region27: #{dqn_full_forward.1} parent=1 // pred_check_branch
      %40 = sbr.rel (0) target = $region29
    $region28: #{dqn_full_forward.1} parent=1 // pred_region
      _
    $region29: #{dqn_full_forward.1} parent=1 // pred_fallthru
      _
    // Predicated region
    $region30: #{dqn_full_forward.1} parent=1 // pred_check
      _
    $region31: #{dqn_full_forward.1} parent=1 // pred_check_branch
      %42 = sbr.rel (0) target = $region33
    $region32: #{dqn_full_forward.1} parent=1 // pred_region
      _
    $region33: #{dqn_full_forward.1} parent=1 // pred_fallthru
      _
    // Predicated region
    $region34: #{dqn_full_forward.1} parent=1 // pred_check
      _
    $region35: #{dqn_full_forward.1} parent=1 // pred_check_branch
      %44 = sbr.rel (0) target = $region37
    $region36: #{dqn_full_forward.1} parent=1 // pred_region
      _
    $region37: #{dqn_full_forward.1} parent=1 // pred_fallthru
      _
    // Predicated region
    $region38: #{dqn_full_forward.1} parent=1 // pred_check
      _
    $region39: #{dqn_full_forward.1} parent=1 // pred_check_branch
      %46 = sbr.rel (0) target = $region41
    $region40: #{dqn_full_forward.1} parent=1 // pred_region
      _
    $region41: #{dqn_full_forward.1} parent=1 // pred_fallthru
      _
    // Predicated region
    $region42: #{dqn_full_forward.1} parent=1 // pred_check
      _
    $region43: #{dqn_full_forward.1} parent=1 // pred_check_branch
      %48 = sbr.rel (0) target = $region45
    $region44: #{dqn_full_forward.1} parent=1 // pred_region
      %49 = dma.done [#allocation3], 14464
    $region45: #{dqn_full_forward.1} parent=1 // pred_fallthru
      _
    %v50 = vld [vmem:[%s0] sm:$0xff]
    %v51 = vld [vmem:[%s0 + $0x8] sm:$0xff]
    %v52 = vld [vmem:[#allocation2] sm:$0xff]
    %v53 = vld [vmem:[#allocation2 + $0x8] sm:$0xff]
    %v54 = vld [vmem:[#allocation2 + $0x10] sm:$0xff]
    %v55 = vld [vmem:[#allocation2 + $0x18] sm:$0xff]
    %v56 = vld [vmem:[#allocation2 + $0x20] sm:$0xff]
    %v57 = vld [vmem:[#allocation2 + $0x28] sm:$0xff]
    %v58 = vld [vmem:[#allocation2 + $0x30] sm:$0xff]
    %v59 = vld [vmem:[#allocation2 + $0x38] sm:$0xff]
    %v60 = vld [vmem:[#allocation2 + $0x40] sm:$0xff]
    %v61 = vld [vmem:[#allocation2 + $0x48] sm:$0xff]
    %v62 = vld [vmem:[#allocation2 + $0x50] sm:$0xff]
    %v63 = vld [vmem:[#allocation2 + $0x58] sm:$0xff]
    %v64 = vld [vmem:[#allocation2 + $0x60] sm:$0xff]
    %v65 = vld [vmem:[#allocation2 + $0x68] sm:$0xff]
    %v66 = vld [vmem:[#allocation2 + $0x70] sm:$0xff]
    %v67 = vld [vmem:[#allocation2 + $0x78] sm:$0xff]
    %v68 = vld [vmem:[#allocation2 + $0x80] sm:$0xff]
    %v69 = vld [vmem:[#allocation2 + $0x88] sm:$0xff]
    %v70 = vld [vmem:[#allocation2 + $0x90] sm:$0xff]
    %v71 = vld [vmem:[#allocation2 + $0x98] sm:$0xff]
    %v72 = vld [vmem:[#allocation2 + $0xa0] sm:$0xff]
    %v73 = vld [vmem:[#allocation2 + $0xa8] sm:$0xff]
    %v74 = vld [vmem:[#allocation2 + $0xb0] sm:$0xff]
    %v75 = vld [vmem:[#allocation2 + $0xb8] sm:$0xff]
    %v76 = vld [vmem:[#allocation2 + $0xc0] sm:$0xff]
    %v77 = vld [vmem:[#allocation2 + $0xc8] sm:$0xff]
    %v78 = vld [vmem:[#allocation2 + $0xd0] sm:$0xff]
    %v79 = vld [vmem:[#allocation2 + $0xd8] sm:$0xff]
    %v80 = vld [vmem:[#allocation2 + $0xe0] sm:$0xff]
    %v81 = vld [vmem:[#allocation2 + $0xe8] sm:$0xff]
    %v82 = vld [vmem:[#allocation2 + $0xf0] sm:$0xff]
    %v83 = vld [vmem:[#allocation2 + $0xf8] sm:$0xff]
    %v84 = vld [vmem:[#allocation2 + $0x100] sm:$0xff]
    %v85 = vld [vmem:[#allocation2 + $0x108] sm:$0xff]
    %v86 = vld [vmem:[#allocation2 + $0x110] sm:$0xff]
    %v87 = vld [vmem:[#allocation2 + $0x118] sm:$0xff]
    %v88 = vld [vmem:[#allocation2 + $0x120] sm:$0xff]
    %v89 = vld [vmem:[#allocation2 + $0x128] sm:$0xff]
    %v90 = vld [vmem:[#allocation2 + $0x130] sm:$0xff]
    %v91 = vld [vmem:[#allocation2 + $0x138] sm:$0xff]
    %v92 = vld [vmem:[#allocation2 + $0x140] sm:$0xff]
    %v93 = vld [vmem:[#allocation2 + $0x148] sm:$0xff]
    %v94 = vld [vmem:[#allocation2 + $0x150] sm:$0xff]
    %v95 = vld [vmem:[#allocation2 + $0x158] sm:$0xff]
    %v96 = vld [vmem:[#allocation2 + $0x160] sm:$0xff]
    %v97 = vld [vmem:[#allocation2 + $0x168] sm:$0xff]
    %v98 = vld [vmem:[#allocation2 + $0x170] sm:$0xff]
    %v99 = vld [vmem:[#allocation2 + $0x178] sm:$0xff]
    %v100 = vld [vmem:[#allocation2 + $0x180] sm:$0xff]
    %v101 = vld [vmem:[#allocation2 + $0x188] sm:$0xff]
    %v102 = vld [vmem:[#allocation2 + $0x190] sm:$0xff]
    %v103 = vld [vmem:[#allocation2 + $0x198] sm:$0xff]
    %v104 = vld [vmem:[#allocation2 + $0x1a0] sm:$0xff]
    %v105 = vld [vmem:[#allocation2 + $0x1a8] sm:$0xff]
    %v106 = vld [vmem:[#allocation2 + $0x1b0] sm:$0xff]
    %v107 = vld [vmem:[#allocation2 + $0x1b8] sm:$0xff]
    %v108 = vld [vmem:[#allocation2 + $0x1c0] sm:$0xff]
    %v109 = vld [vmem:[#allocation2 + $0x1c8] sm:$0xff]
    %v110 = vld [vmem:[#allocation2 + $0x1d0] sm:$0xff]
    %v111 = vld [vmem:[#allocation2 + $0x1d8] sm:$0xff]
    %v112 = vld [vmem:[#allocation2 + $0x1e0] sm:$0xff]
    %v113 = vld [vmem:[#allocation2 + $0x1e8] sm:$0xff]
    %v114 = vld [vmem:[#allocation2 + $0x1f0] sm:$0xff]
    %v115 = vld [vmem:[#allocation2 + $0x1f8] sm:$0xff]
    %v116 = vld [vmem:[#allocation2 + $0x200] sm:$0xff]
    %v117 = vld [vmem:[#allocation2 + $0x208] sm:$0xff]
    %v118 = vld [vmem:[#allocation2 + $0x210] sm:$0xff]
    %v119 = vld [vmem:[#allocation2 + $0x218] sm:$0xff]
    %v120 = vld [vmem:[#allocation2 + $0x220] sm:$0xff]
    %v121 = vld [vmem:[#allocation2 + $0x228] sm:$0xff]
    %v122 = vld [vmem:[#allocation2 + $0x230] sm:$0xff]
    %v123 = vld [vmem:[#allocation2 + $0x238] sm:$0xff]
    %v124 = vld [vmem:[#allocation2 + $0x240] sm:$0xff]
    %v125 = vld [vmem:[#allocation2 + $0x248] sm:$0xff]
    %v126 = vld [vmem:[#allocation2 + $0x250] sm:$0xff]
    %v127 = vld [vmem:[#allocation2 + $0x258] sm:$0xff]
    %v128 = vld [vmem:[#allocation2 + $0x260] sm:$0xff]
    %v129 = vld [vmem:[#allocation2 + $0x268] sm:$0xff]
    %v130 = vld [vmem:[#allocation2 + $0x270] sm:$0xff]
    %v131 = vld [vmem:[#allocation2 + $0x278] sm:$0xff]
    %v132 = vld [vmem:[#allocation2 + $0x280] sm:$0xff]
    %v133 = vld [vmem:[#allocation2 + $0x288] sm:$0xff]
    %v134 = vld [vmem:[#allocation2 + $0x290] sm:$0xff]
    %v135 = vld [vmem:[#allocation2 + $0x298] sm:$0xff]
    %v136 = vld [vmem:[#allocation2 + $0x2a0] sm:$0xff]
    %v137 = vld [vmem:[#allocation2 + $0x2a8] sm:$0xff]
    %v138 = vld [vmem:[#allocation2 + $0x2b0] sm:$0xff]
    %v139 = vld [vmem:[#allocation2 + $0x2b8] sm:$0xff]
    %v140 = vld [vmem:[#allocation2 + $0x2c0] sm:$0xff]
    %v141 = vld [vmem:[#allocation2 + $0x2c8] sm:$0xff]
    %v142 = vld [vmem:[#allocation2 + $0x2d0] sm:$0xff]
    %v143 = vld [vmem:[#allocation2 + $0x2d8] sm:$0xff]
    %v144 = vld [vmem:[#allocation2 + $0x2e0] sm:$0xff]
    %v145 = vld [vmem:[#allocation2 + $0x2e8] sm:$0xff]
    %v146 = vld [vmem:[#allocation2 + $0x2f0] sm:$0xff]
    %v147 = vld [vmem:[#allocation2 + $0x2f8] sm:$0xff]
    %v148 = vld [vmem:[#allocation2 + $0x300] sm:$0xff]
    %v149 = vld [vmem:[#allocation2 + $0x308] sm:$0xff]
    %v150 = vld [vmem:[#allocation2 + $0x310] sm:$0xff]
    %v151 = vld [vmem:[#allocation2 + $0x318] sm:$0xff]
    %v152 = vld [vmem:[#allocation2 + $0x320] sm:$0xff]
    %v153 = vld [vmem:[#allocation2 + $0x328] sm:$0xff]
    %v154 = vld [vmem:[#allocation2 + $0x330] sm:$0xff]
    %v155 = vld [vmem:[#allocation2 + $0x338] sm:$0xff]
    %v156 = vld [vmem:[#allocation2 + $0x340] sm:$0xff]
    %v157 = vld [vmem:[#allocation2 + $0x348] sm:$0xff]
    %v158 = vld [vmem:[#allocation2 + $0x350] sm:$0xff]
    %v159 = vld [vmem:[#allocation2 + $0x358] sm:$0xff]
    %v160 = vld [vmem:[#allocation2 + $0x360] sm:$0xff]
    %v161 = vld [vmem:[#allocation2 + $0x368] sm:$0xff]
    %v162 = vld [vmem:[#allocation2 + $0x370] sm:$0xff]
    %v163 = vld [vmem:[#allocation2 + $0x378] sm:$0xff]
    %v164 = vld [vmem:[#allocation2 + $0x380] sm:$0xf]
    %v165 = vld [vmem:[%s3] sm:$0x1]
    %v167 = vlaneseq
    %v168 = vshrl.u32 %v167, 7
    %v169 = vsub.s32 0, %v168
    %v170 = vrot.slane %v165, %v169
    %v174 = vcombine.high %v50, %v50
    %v176 = vunpack.c.l.s4 1983009808
    %v177 = vunpack.c.0.s8 %v176
    %v178 = vlaneseq
    %v179 = vshrl.u32 %v178, 7
    %v180 = vsub.s32 %v177, %v179
    %v181 = vrot.slane %v50, %v180
    %v183 = vunpack.c.l.s4 1983009808
    %v184 = vunpack.c.0.s8 %v183
    %v185 = vlaneseq
    %v186 = vshrl.u32 %v185, 7
    %v187 = vsub.s32 %v184, %v186
    %v188 = vrot.slane %v174, %v187
    %v189 = vcombine.high %v181, %v181
    %v190 = vcombine.high %v188, %v188
    %v191 = vcombine.high %v51, %v51
    %v193 = vunpack.c.l.s4 1983009808
    %v194 = vunpack.c.0.s8 %v193
    %v195 = vlaneseq
    %v196 = vshrl.u32 %v195, 7
    %v197 = vsub.s32 %v194, %v196
    %v198 = vrot.slane %v51, %v197
    %v200 = vunpack.c.l.s4 1983009808
    %v201 = vunpack.c.0.s8 %v200
    %v202 = vlaneseq
    %v203 = vshrl.u32 %v202, 7
    %v204 = vsub.s32 %v201, %v203
    %v205 = vrot.slane %v191, %v204
    %v206 = vcombine.high %v198, %v198
    %v207 = vcombine.high %v205, %v205
    %vm215 = vcmask 31744
    %v216 = vsel %vm215, %v207, 0
    %vm218 = vcmask 1043456
    %v220 = vsel %vm218, %v164, 0
    %222 = vmatprep.subr.mxu0 0.0
    %223 = vmatpush1.msra.mxu0 %v67
    %224 = vmatprep.subr.mxu0 0.0
    %225 = vmatpush1.msra.mxu0 %v66
    %226 = vmatprep.subr.mxu0 0.0
    %227 = vmatpush1.msra.mxu0 %v65
    %228 = vmatprep.subr.mxu0 0.0
    %229 = vmatpush1.msra.mxu0 %v64
    %230 = vmatprep.subr.mxu0 0.0
    %231 = vmatpush1.msra.mxu0 %v63
    %232 = vmatprep.subr.mxu0 0.0
    %233 = vmatpush1.msra.mxu0 %v62
    %234 = vmatprep.subr.mxu0 0.0
    %235 = vmatpush1.msra.mxu0 %v61
    %236 = vmatprep.subr.mxu0 0.0
    %237 = vmatpush1.msra.mxu0 %v60
    %238 = vmatprep.subr.mxu0 0.0
    %239 = vmatpush1.msra.mxu0 %v59
    %240 = vmatprep.subr.mxu0 0.0
    %241 = vmatpush1.msra.mxu0 %v58
    %242 = vmatprep.subr.mxu0 0.0
    %243 = vmatpush1.msra.mxu0 %v57
    %244 = vmatprep.subr.mxu0 0.0
    %245 = vmatpush1.msra.mxu0 %v56
    %246 = vmatprep.subr.mxu0 0.0
    %247 = vmatpush1.msra.mxu0 %v55
    %248 = vmatprep.subr.mxu0 0.0
    %249 = vmatpush1.msra.mxu0 %v54
    %250 = vmatprep.subr.mxu0 0.0
    %251 = vmatpush1.msra.mxu0 %v53
    %252 = vmatprep.subr.mxu0 0.0
    %253 = vmatpush1.msra.mxu0 %v52
    %254 = vmatprep.subr.mxu0 0.0
    %255 = vmatpush2.msra.mxu0 %v83
    %256 = vmatprep.subr.mxu0 0.0
    %257 = vmatpush2.msra.mxu0 %v82
    %258 = vmatprep.subr.mxu0 0.0
    %259 = vmatpush2.msra.mxu0 %v81
    %260 = vmatprep.subr.mxu0 0.0
    %261 = vmatpush2.msra.mxu0 %v80
    %262 = vmatprep.subr.mxu0 0.0
    %263 = vmatpush2.msra.mxu0 %v79
    %264 = vmatprep.subr.mxu0 0.0
    %265 = vmatpush2.msra.mxu0 %v78
    %266 = vmatprep.subr.mxu0 0.0
    %267 = vmatpush2.msra.mxu0 %v77
    %268 = vmatprep.subr.mxu0 0.0
    %269 = vmatpush2.msra.mxu0 %v76
    %270 = vmatprep.subr.mxu0 0.0
    %271 = vmatpush2.msra.mxu0 %v75
    %272 = vmatprep.subr.mxu0 0.0
    %273 = vmatpush2.msra.mxu0 %v74
    %274 = vmatprep.subr.mxu0 0.0
    %275 = vmatpush2.msra.mxu0 %v73
    %276 = vmatprep.subr.mxu0 0.0
    %277 = vmatpush2.msra.mxu0 %v72
    %278 = vmatprep.subr.mxu0 0.0
    %279 = vmatpush2.msra.mxu0 %v71
    %280 = vmatprep.subr.mxu0 0.0
    %281 = vmatpush2.msra.mxu0 %v70
    %282 = vmatprep.subr.mxu0 0.0
    %283 = vmatpush2.msra.mxu0 %v69
    %284 = vmatprep.subr.mxu0 0.0
    %285 = vmatpush2.msra.mxu0 %v68
    %286 = vmatprep.mubr.f32.mxu0 %v189
    %287 = vmatmul.mubr.f32.gmra.mxu0 %v181
    %v288 = vpop.f32.mrf.mxu0
    %v289 = vadd.f32 %v170, %v288
    %v290 = vpop.f32.mrf.mxu0
    %291 = vdwg.mxu0
    %292 = vmatprep.subr.mxu0 0.0
    %293 = vmatpush1.msra.mxu0 %v99
    %294 = vmatprep.subr.mxu0 0.0
    %295 = vmatpush1.msra.mxu0 %v98
    %296 = vmatprep.subr.mxu0 0.0
    %297 = vmatpush1.msra.mxu0 %v97
    %298 = vmatprep.subr.mxu0 0.0
    %299 = vmatpush1.msra.mxu0 %v96
    %300 = vmatprep.subr.mxu0 0.0
    %301 = vmatpush1.msra.mxu0 %v95
    %302 = vmatprep.subr.mxu0 0.0
    %303 = vmatpush1.msra.mxu0 %v94
    %304 = vmatprep.subr.mxu0 0.0
    %305 = vmatpush1.msra.mxu0 %v93
    %306 = vmatprep.subr.mxu0 0.0
    %307 = vmatpush1.msra.mxu0 %v92
    %308 = vmatprep.subr.mxu0 0.0
    %309 = vmatpush1.msra.mxu0 %v91
    %310 = vmatprep.subr.mxu0 0.0
    %311 = vmatpush1.msra.mxu0 %v90
    %312 = vmatprep.subr.mxu0 0.0
    %313 = vmatpush1.msra.mxu0 %v89
    %314 = vmatprep.subr.mxu0 0.0
    %315 = vmatpush1.msra.mxu0 %v88
    %316 = vmatprep.subr.mxu0 0.0
    %317 = vmatpush1.msra.mxu0 %v87
    %318 = vmatprep.subr.mxu0 0.0
    %319 = vmatpush1.msra.mxu0 %v86
    %320 = vmatprep.subr.mxu0 0.0
    %321 = vmatpush1.msra.mxu0 %v85
    %322 = vmatprep.subr.mxu0 0.0
    %323 = vmatpush1.msra.mxu0 %v84
    %324 = vmatprep.subr.mxu0 0.0
    %325 = vmatpush2.msra.mxu0 %v115
    %326 = vmatprep.subr.mxu0 0.0
    %327 = vmatpush2.msra.mxu0 %v114
    %328 = vmatprep.subr.mxu0 0.0
    %329 = vmatpush2.msra.mxu0 %v113
    %330 = vmatprep.subr.mxu0 0.0
    %331 = vmatpush2.msra.mxu0 %v112
    %332 = vmatprep.subr.mxu0 0.0
    %333 = vmatpush2.msra.mxu0 %v111
    %334 = vmatprep.subr.mxu0 0.0
    %335 = vmatpush2.msra.mxu0 %v110
    %336 = vmatprep.subr.mxu0 0.0
    %337 = vmatpush2.msra.mxu0 %v109
    %338 = vmatprep.subr.mxu0 0.0
    %339 = vmatpush2.msra.mxu0 %v108
    %340 = vmatprep.subr.mxu0 0.0
    %341 = vmatpush2.msra.mxu0 %v107
    %342 = vmatprep.subr.mxu0 0.0
    %343 = vmatpush2.msra.mxu0 %v106
    %344 = vmatprep.subr.mxu0 0.0
    %345 = vmatpush2.msra.mxu0 %v105
    %346 = vmatprep.subr.mxu0 0.0
    %347 = vmatpush2.msra.mxu0 %v104
    %348 = vmatprep.subr.mxu0 0.0
    %349 = vmatpush2.msra.mxu0 %v103
    %350 = vmatprep.subr.mxu0 0.0
    %351 = vmatpush2.msra.mxu0 %v102
    %352 = vmatprep.subr.mxu0 0.0
    %353 = vmatpush2.msra.mxu0 %v101
    %354 = vmatprep.subr.mxu0 0.0
    %355 = vmatpush2.msra.mxu0 %v100
    %356 = vmatprep.mubr.f32.mxu0 %v190
    %357 = vmatmul.mubr.f32.gmra.mxu0 %v188
    %v358 = vpop.f32.mrf.mxu0
    %v359 = vadd.f32 %v289, %v358
    %v360 = vpop.f32.mrf.mxu0
    %361 = vdwg.mxu0
    %362 = vmatprep.subr.mxu0 0.0
    %363 = vmatpush1.msra.mxu0 %v131
    %364 = vmatprep.subr.mxu0 0.0
    %365 = vmatpush1.msra.mxu0 %v130
    %366 = vmatprep.subr.mxu0 0.0
    %367 = vmatpush1.msra.mxu0 %v129
    %368 = vmatprep.subr.mxu0 0.0
    %369 = vmatpush1.msra.mxu0 %v128
    %370 = vmatprep.subr.mxu0 0.0
    %371 = vmatpush1.msra.mxu0 %v127
    %372 = vmatprep.subr.mxu0 0.0
    %373 = vmatpush1.msra.mxu0 %v126
    %374 = vmatprep.subr.mxu0 0.0
    %375 = vmatpush1.msra.mxu0 %v125
    %376 = vmatprep.subr.mxu0 0.0
    %377 = vmatpush1.msra.mxu0 %v124
    %378 = vmatprep.subr.mxu0 0.0
    %379 = vmatpush1.msra.mxu0 %v123
    %380 = vmatprep.subr.mxu0 0.0
    %381 = vmatpush1.msra.mxu0 %v122
    %382 = vmatprep.subr.mxu0 0.0
    %383 = vmatpush1.msra.mxu0 %v121
    %384 = vmatprep.subr.mxu0 0.0
    %385 = vmatpush1.msra.mxu0 %v120
    %386 = vmatprep.subr.mxu0 0.0
    %387 = vmatpush1.msra.mxu0 %v119
    %388 = vmatprep.subr.mxu0 0.0
    %389 = vmatpush1.msra.mxu0 %v118
    %390 = vmatprep.subr.mxu0 0.0
    %391 = vmatpush1.msra.mxu0 %v117
    %392 = vmatprep.subr.mxu0 0.0
    %393 = vmatpush1.msra.mxu0 %v116
    %394 = vmatprep.subr.mxu0 0.0
    %395 = vmatpush2.msra.mxu0 %v147
    %396 = vmatprep.subr.mxu0 0.0
    %397 = vmatpush2.msra.mxu0 %v146
    %398 = vmatprep.subr.mxu0 0.0
    %399 = vmatpush2.msra.mxu0 %v145
    %400 = vmatprep.subr.mxu0 0.0
    %401 = vmatpush2.msra.mxu0 %v144
    %402 = vmatprep.subr.mxu0 0.0
    %403 = vmatpush2.msra.mxu0 %v143
    %404 = vmatprep.subr.mxu0 0.0
    %405 = vmatpush2.msra.mxu0 %v142
    %406 = vmatprep.subr.mxu0 0.0
    %407 = vmatpush2.msra.mxu0 %v141
    %408 = vmatprep.subr.mxu0 0.0
    %409 = vmatpush2.msra.mxu0 %v140
    %410 = vmatprep.subr.mxu0 0.0
    %411 = vmatpush2.msra.mxu0 %v139
    %412 = vmatprep.subr.mxu0 0.0
    %413 = vmatpush2.msra.mxu0 %v138
    %414 = vmatprep.subr.mxu0 0.0
    %415 = vmatpush2.msra.mxu0 %v137
    %416 = vmatprep.subr.mxu0 0.0
    %417 = vmatpush2.msra.mxu0 %v136
    %418 = vmatprep.subr.mxu0 0.0
    %419 = vmatpush2.msra.mxu0 %v135
    %420 = vmatprep.subr.mxu0 0.0
    %421 = vmatpush2.msra.mxu0 %v134
    %422 = vmatprep.subr.mxu0 0.0
    %423 = vmatpush2.msra.mxu0 %v133
    %424 = vmatprep.subr.mxu0 0.0
    %425 = vmatpush2.msra.mxu0 %v132
    %426 = vmatprep.mubr.f32.mxu0 %v206
    %427 = vmatmul.mubr.f32.gmra.mxu0 %v198
    %v428 = vpop.f32.mrf.mxu0
    %v429 = vadd.f32 %v359, %v428
    %v430 = vpop.f32.mrf.mxu0
    %431 = vdwg.mxu0
    %432 = vmatprep.subr.mxu0 0.0
    %433 = vmatpush1.msra.mxu0 %v163
    %434 = vmatprep.subr.mxu0 0.0
    %435 = vmatpush1.msra.mxu0 %v162
    %436 = vmatprep.subr.mxu0 0.0
    %437 = vmatpush1.msra.mxu0 %v161
    %438 = vmatprep.subr.mxu0 0.0
    %439 = vmatpush1.msra.mxu0 %v160
    %440 = vmatprep.subr.mxu0 0.0
    %441 = vmatpush1.msra.mxu0 %v159
    %442 = vmatprep.subr.mxu0 0.0
    %443 = vmatpush1.msra.mxu0 %v158
    %444 = vmatprep.subr.mxu0 0.0
    %445 = vmatpush1.msra.mxu0 %v157
    %446 = vmatprep.subr.mxu0 0.0
    %447 = vmatpush1.msra.mxu0 %v156
    %448 = vmatprep.subr.mxu0 0.0
    %449 = vmatpush1.msra.mxu0 %v155
    %450 = vmatprep.subr.mxu0 0.0
    %451 = vmatpush1.msra.mxu0 %v154
    %452 = vmatprep.subr.mxu0 0.0
    %453 = vmatpush1.msra.mxu0 %v153
    %454 = vmatprep.subr.mxu0 0.0
    %455 = vmatpush1.msra.mxu0 %v152
    %456 = vmatprep.subr.mxu0 0.0
    %457 = vmatpush1.msra.mxu0 %v151
    %458 = vmatprep.subr.mxu0 0.0
    %459 = vmatpush1.msra.mxu0 %v150
    %460 = vmatprep.subr.mxu0 0.0
    %461 = vmatpush1.msra.mxu0 %v149
    %462 = vmatprep.subr.mxu0 0.0
    %463 = vmatpush1.msra.mxu0 %v148
    %464 = vmatprep.subr.mxu0 0.0
    %465 = vmatpush2.msra.mxu0 0.0
    %466 = vmatprep.subr.mxu0 0.0
    %467 = vmatpush2.msra.mxu0 0.0
    %468 = vmatprep.subr.mxu0 0.0
    %469 = vmatpush2.msra.mxu0 0.0
    %470 = vmatprep.subr.mxu0 0.0
    %471 = vmatpush2.msra.mxu0 0.0
    %472 = vmatprep.subr.mxu0 0.0
    %473 = vmatpush2.msra.mxu0 0.0
    %474 = vmatprep.subr.mxu0 0.0
    %475 = vmatpush2.msra.mxu0 0.0
    %476 = vmatprep.subr.mxu0 0.0
    %477 = vmatpush2.msra.mxu0 0.0
    %478 = vmatprep.subr.mxu0 0.0
    %479 = vmatpush2.msra.mxu0 0.0
    %480 = vmatprep.subr.mxu0 0.0
    %481 = vmatpush2.msra.mxu0 0.0
    %482 = vmatprep.subr.mxu0 0.0
    %483 = vmatpush2.msra.mxu0 0.0
    %484 = vmatprep.subr.mxu0 0.0
    %485 = vmatpush2.msra.mxu0 0.0
    %486 = vmatprep.subr.mxu0 0.0
    %487 = vmatpush2.msra.mxu0 0.0
    %488 = vmatprep.subr.mxu0 0.0
    %489 = vmatpush2.msra.mxu0 0.0
    %490 = vmatprep.subr.mxu0 0.0
    %491 = vmatpush2.msra.mxu0 0.0
    %492 = vmatprep.subr.mxu0 0.0
    %493 = vmatpush2.msra.mxu0 0.0
    %494 = vmatprep.subr.mxu0 0.0
    %495 = vmatpush2.msra.mxu0 %v220
    %496 = vmatprep.mubr.f32.mxu0 %v216
    %497 = vmatmul.mubr.f32.gmra.mxu0 %v205
    %v498 = vpop.f32.mrf.mxu0
    %v499 = vadd.f32 %v429, %v498
    %v500 = vpop.f32.mrf.mxu0
    %501 = vdwg.mxu0
    %v502 = vmax.f32 %v499, 0.0
    %v503 = vld [vmem:[%s1] sm:$0xf]
    %v504 = vld [vmem:[%s4] sm:$0xff]
    %v505 = vld [vmem:[%s4 + $0x8] sm:$0xff]
    %v506 = vld [vmem:[%s4 + $0x10] sm:$0xff]
    %v507 = vld [vmem:[%s4 + $0x18] sm:$0xff]
    %v508 = vld [vmem:[%s4 + $0x20] sm:$0xff]
    %v509 = vld [vmem:[%s4 + $0x28] sm:$0xff]
    %v510 = vld [vmem:[%s4 + $0x30] sm:$0xff]
    %v511 = vld [vmem:[%s4 + $0x38] sm:$0xff]
    %v512 = vld [vmem:[%s4 + $0x40] sm:$0xff]
    %v513 = vld [vmem:[%s4 + $0x48] sm:$0xff]
    %v514 = vld [vmem:[%s4 + $0x50] sm:$0xff]
    %v515 = vld [vmem:[%s4 + $0x58] sm:$0xff]
    %v516 = vld [vmem:[%s4 + $0x60] sm:$0xff]
    %v517 = vld [vmem:[%s4 + $0x68] sm:$0xff]
    %v518 = vld [vmem:[%s4 + $0x70] sm:$0xff]
    %v519 = vld [vmem:[%s4 + $0x78] sm:$0xff]
    %v520 = vld [vmem:[%s4 + $0x80] sm:$0xff]
    %v521 = vld [vmem:[%s4 + $0x88] sm:$0xff]
    %v522 = vld [vmem:[%s4 + $0x90] sm:$0xff]
    %v523 = vld [vmem:[%s4 + $0x98] sm:$0xff]
    %v524 = vld [vmem:[%s4 + $0xa0] sm:$0xff]
    %v525 = vld [vmem:[%s4 + $0xa8] sm:$0xff]
    %v526 = vld [vmem:[%s4 + $0xb0] sm:$0xff]
    %v527 = vld [vmem:[%s4 + $0xb8] sm:$0xff]
    %v528 = vld [vmem:[%s4 + $0xc0] sm:$0xf]
    %v529 = vld [vmem:[%s5] sm:$0x1]
    %v531 = vlaneseq
    %v532 = vshrl.u32 %v531, 7
    %v533 = vsub.s32 0, %v532
    %v534 = vrot.slane %v529, %v533
    %v538 = vunpack.c.l.s4 1983009808
    %v539 = vunpack.c.0.s8 %v538
    %v540 = vlaneseq
    %v541 = vshrl.u32 %v540, 7
    %v542 = vsub.s32 %v539, %v541
    %v543 = vrot.slane %v503, %v542
    %v544 = vcombine.high %v543, %v543
    %vm546 = vcmask 556032
    %v547 = vsel %vm546, %v544, 0
    %v550 = vsel %vm218, %v528, 0
    %552 = vmatprep.subr.mxu0 0.0
    %553 = vmatpush1.msra.mxu0 %v519
    %554 = vmatprep.subr.mxu0 0.0
    %555 = vmatpush1.msra.mxu0 %v518
    %556 = vmatprep.subr.mxu0 0.0
    %557 = vmatpush1.msra.mxu0 %v517
    %558 = vmatprep.subr.mxu0 0.0
    %559 = vmatpush1.msra.mxu0 %v516
    %560 = vmatprep.subr.mxu0 0.0
    %561 = vmatpush1.msra.mxu0 %v515
    %562 = vmatprep.subr.mxu0 0.0
    %563 = vmatpush1.msra.mxu0 %v514
    %564 = vmatprep.subr.mxu0 0.0
    %565 = vmatpush1.msra.mxu0 %v513
    %566 = vmatprep.subr.mxu0 0.0
    %567 = vmatpush1.msra.mxu0 %v512
    %568 = vmatprep.subr.mxu0 0.0
    %569 = vmatpush1.msra.mxu0 %v511
    %570 = vmatprep.subr.mxu0 0.0
    %571 = vmatpush1.msra.mxu0 %v510
    %572 = vmatprep.subr.mxu0 0.0
    %573 = vmatpush1.msra.mxu0 %v509
    %574 = vmatprep.subr.mxu0 0.0
    %575 = vmatpush1.msra.mxu0 %v508
    %576 = vmatprep.subr.mxu0 0.0
    %577 = vmatpush1.msra.mxu0 %v507
    %578 = vmatprep.subr.mxu0 0.0
    %579 = vmatpush1.msra.mxu0 %v506
    %580 = vmatprep.subr.mxu0 0.0
    %581 = vmatpush1.msra.mxu0 %v505
    %582 = vmatprep.subr.mxu0 0.0
    %583 = vmatpush1.msra.mxu0 %v504
    %584 = vmatprep.subr.mxu0 0.0
    %585 = vmatpush2.msra.mxu0 0.0
    %586 = vmatprep.subr.mxu0 0.0
    %587 = vmatpush2.msra.mxu0 0.0
    %588 = vmatprep.subr.mxu0 0.0
    %589 = vmatpush2.msra.mxu0 0.0
    %590 = vmatprep.subr.mxu0 0.0
    %591 = vmatpush2.msra.mxu0 0.0
    %592 = vmatprep.subr.mxu0 0.0
    %593 = vmatpush2.msra.mxu0 0.0
    %594 = vmatprep.subr.mxu0 0.0
    %595 = vmatpush2.msra.mxu0 0.0
    %596 = vmatprep.subr.mxu0 0.0
    %597 = vmatpush2.msra.mxu0 0.0
    %598 = vmatprep.subr.mxu0 0.0
    %599 = vmatpush2.msra.mxu0 %v550
    %600 = vmatprep.subr.mxu0 0.0
    %601 = vmatpush2.msra.mxu0 %v527
    %602 = vmatprep.subr.mxu0 0.0
    %603 = vmatpush2.msra.mxu0 %v526
    %604 = vmatprep.subr.mxu0 0.0
    %605 = vmatpush2.msra.mxu0 %v525
    %606 = vmatprep.subr.mxu0 0.0
    %607 = vmatpush2.msra.mxu0 %v524
    %608 = vmatprep.subr.mxu0 0.0
    %609 = vmatpush2.msra.mxu0 %v523
    %610 = vmatprep.subr.mxu0 0.0
    %611 = vmatpush2.msra.mxu0 %v522
    %612 = vmatprep.subr.mxu0 0.0
    %613 = vmatpush2.msra.mxu0 %v521
    %614 = vmatprep.subr.mxu0 0.0
    %615 = vmatpush2.msra.mxu0 %v520
    %616 = vmatprep.mubr.f32.mxu0 %v547
    %617 = vmatmul.mubr.f32.gmra.mxu0 %v543
    %v618 = vpop.f32.mrf.mxu0
    %v619 = vadd.f32 %v534, %v618
    %v620 = vpop.f32.mrf.mxu0
    %621 = vdwg.mxu0
    %v622 = vmax.f32 %v619, 0.0
    %v623 = vld [vmem:[%s6] sm:$0xff]
    %v624 = vld [vmem:[%s6 + $0x8] sm:$0xff]
    %v625 = vld [vmem:[%s6 + $0x10] sm:$0xff]
    %v626 = vld [vmem:[%s6 + $0x18] sm:$0xff]
    %v627 = vld [vmem:[%s6 + $0x20] sm:$0xff]
    %v628 = vld [vmem:[%s6 + $0x28] sm:$0xff]
    %v629 = vld [vmem:[%s6 + $0x30] sm:$0xff]
    %v630 = vld [vmem:[%s6 + $0x38] sm:$0xff]
    %v631 = vld [vmem:[%s6 + $0x40] sm:$0xff]
    %v632 = vld [vmem:[%s6 + $0x48] sm:$0xff]
    %v633 = vld [vmem:[%s6 + $0x50] sm:$0xff]
    %v634 = vld [vmem:[%s6 + $0x58] sm:$0xff]
    %v635 = vld [vmem:[%s6 + $0x60] sm:$0xff]
    %v636 = vld [vmem:[%s6 + $0x68] sm:$0xff]
    %v637 = vld [vmem:[%s6 + $0x70] sm:$0xff]
    %v638 = vld [vmem:[%s6 + $0x78] sm:$0xff]
    %v639 = vld [vmem:[%s6 + $0x80] sm:$0xff]
    %v640 = vld [vmem:[%s6 + $0x88] sm:$0xff]
    %v641 = vld [vmem:[%s6 + $0x90] sm:$0xff]
    %v642 = vld [vmem:[%s6 + $0x98] sm:$0xff]
    %v643 = vld [vmem:[%s6 + $0xa0] sm:$0xff]
    %v644 = vld [vmem:[%s6 + $0xa8] sm:$0xff]
    %v645 = vld [vmem:[%s6 + $0xb0] sm:$0xff]
    %v646 = vld [vmem:[%s6 + $0xb8] sm:$0xff]
    %v647 = vld [vmem:[%s6 + $0xc0] sm:$0xff]
    %v648 = vld [vmem:[%s6 + $0xc8] sm:$0xff]
    %v649 = vld [vmem:[%s6 + $0xd0] sm:$0xff]
    %v650 = vld [vmem:[%s6 + $0xd8] sm:$0xff]
    %v651 = vld [vmem:[%s6 + $0xe0] sm:$0xff]
    %v652 = vld [vmem:[%s6 + $0xe8] sm:$0xff]
    %v653 = vld [vmem:[%s6 + $0xf0] sm:$0xff]
    %v654 = vld [vmem:[%s6 + $0xf8] sm:$0xff]
    %v655 = vld [vmem:[%s6 + $0x100] sm:$0xff]
    %v656 = vld [vmem:[%s6 + $0x108] sm:$0xff]
    %v657 = vld [vmem:[%s6 + $0x110] sm:$0xff]
    %v658 = vld [vmem:[%s6 + $0x118] sm:$0xff]
    %v659 = vld [vmem:[%s6 + $0x120] sm:$0xff]
    %v660 = vld [vmem:[%s6 + $0x128] sm:$0xff]
    %v661 = vld [vmem:[%s6 + $0x130] sm:$0xff]
    %v662 = vld [vmem:[%s6 + $0x138] sm:$0xff]
    %v663 = vld [vmem:[%s7] sm:$0x3]
    %v665 = vlaneseq
    %v666 = vshrl.u32 %v665, 7
    %v667 = vsub.s32 0, %v666
    %v668 = vrot.slane %v663, %v667
    %v669 = vlaneseq
    %v670 = vshrl.u32 %v669, 7
    %v671 = vsub.s32 1, %v670
    %v672 = vrot.slane %v663, %v671
    %vm675 = vcmask 261120
    %v677 = vsel %vm675, %v622, 0
    %679 = vmatprep.subr.mxu0 %v654
    %680 = vmatpush1.msra.mxu0 %v653
    %681 = vmatprep.subr.mxu0 %v652
    %682 = vmatpush1.msra.mxu0 %v651
    %683 = vmatprep.subr.mxu0 %v650
    %684 = vmatpush1.msra.mxu0 %v649
    %685 = vmatprep.subr.mxu0 %v648
    %686 = vmatpush1.msra.mxu0 %v647
    %687 = vmatprep.subr.mxu0 %v646
    %688 = vmatpush1.msra.mxu0 %v645
    %689 = vmatprep.subr.mxu0 %v644
    %690 = vmatpush1.msra.mxu0 %v643
    %691 = vmatprep.subr.mxu0 %v642
    %692 = vmatpush1.msra.mxu0 %v641
    %693 = vmatprep.subr.mxu0 %v640
    %694 = vmatpush1.msra.mxu0 %v639
    %695 = vmatprep.subr.mxu0 %v638
    %696 = vmatpush1.msra.mxu0 %v637
    %697 = vmatprep.subr.mxu0 %v636
    %698 = vmatpush1.msra.mxu0 %v635
    %699 = vmatprep.subr.mxu0 %v634
    %700 = vmatpush1.msra.mxu0 %v633
    %701 = vmatprep.subr.mxu0 %v632
    %702 = vmatpush1.msra.mxu0 %v631
    %703 = vmatprep.subr.mxu0 %v630
    %704 = vmatpush1.msra.mxu0 %v629
    %705 = vmatprep.subr.mxu0 %v628
    %706 = vmatpush1.msra.mxu0 %v627
    %707 = vmatprep.subr.mxu0 %v626
    %708 = vmatpush1.msra.mxu0 %v625
    %709 = vmatprep.subr.mxu0 %v624
    %710 = vmatpush1.msra.mxu0 %v623
    %711 = vmatprep.subr.mxu0 0.0
    %712 = vmatpush2.msra.mxu0 0.0
    %713 = vmatprep.subr.mxu0 0.0
    %714 = vmatpush2.msra.mxu0 0.0
    %715 = vmatprep.subr.mxu0 0.0
    %716 = vmatpush2.msra.mxu0 0.0
    %717 = vmatprep.subr.mxu0 0.0
    %718 = vmatpush2.msra.mxu0 0.0
    %719 = vmatprep.subr.mxu0 0.0
    %720 = vmatpush2.msra.mxu0 0.0
    %721 = vmatprep.subr.mxu0 0.0
    %722 = vmatpush2.msra.mxu0 0.0
    %723 = vmatprep.subr.mxu0 0.0
    %724 = vmatpush2.msra.mxu0 0.0
    %725 = vmatprep.subr.mxu0 0.0
    %726 = vmatpush2.msra.mxu0 0.0
    %727 = vmatprep.subr.mxu0 0.0
    %728 = vmatpush2.msra.mxu0 0.0
    %729 = vmatprep.subr.mxu0 0.0
    %730 = vmatpush2.msra.mxu0 0.0
    %731 = vmatprep.subr.mxu0 0.0
    %732 = vmatpush2.msra.mxu0 0.0
    %733 = vmatprep.subr.mxu0 0.0
    %734 = vmatpush2.msra.mxu0 0.0
    %735 = vmatprep.subr.mxu0 %v662
    %736 = vmatpush2.msra.mxu0 %v661
    %737 = vmatprep.subr.mxu0 %v660
    %738 = vmatpush2.msra.mxu0 %v659
    %739 = vmatprep.subr.mxu0 %v658
    %740 = vmatpush2.msra.mxu0 %v657
    %741 = vmatprep.subr.mxu0 %v656
    %742 = vmatpush2.msra.mxu0 %v655
    %743 = vmatprep.mubr.f32.mxu0 %v677
    %744 = vmatmul.mubr.f32.gmra.mxu0 %v502
    %v745 = vpop.f32.mrf.mxu0
    %v746 = vadd.f32 %v668, %v745
    %v747 = vpop.f32.mrf.mxu0
    %v748 = vadd.f32 %v672, %v747
    %749 = vdwg.mxu0
    %v750 = vmax.f32 %v746, 0.0
    %v751 = vmax.f32 %v748, 0.0
    %v752 = vld [vmem:[%s8] sm:$0xff]
    %v753 = vld [vmem:[%s8 + $0x8] sm:$0xff]
    %v754 = vld [vmem:[%s8 + $0x10] sm:$0xff]
    %v755 = vld [vmem:[%s8 + $0x18] sm:$0xff]
    %v756 = vld [vmem:[%s8 + $0x20] sm:$0xff]
    %v757 = vld [vmem:[%s8 + $0x28] sm:$0xff]
    %v758 = vld [vmem:[%s8 + $0x30] sm:$0xff]
    %v759 = vld [vmem:[%s8 + $0x38] sm:$0xff]
    %v760 = vld [vmem:[%s8 + $0x40] sm:$0xff]
    %v761 = vld [vmem:[%s8 + $0x48] sm:$0xff]
    %v762 = vld [vmem:[%s8 + $0x50] sm:$0xff]
    %v763 = vld [vmem:[%s8 + $0x58] sm:$0xff]
    %v764 = vld [vmem:[%s8 + $0x60] sm:$0xff]
    %v765 = vld [vmem:[%s8 + $0x68] sm:$0xff]
    %v766 = vld [vmem:[%s8 + $0x70] sm:$0xff]
    %v767 = vld [vmem:[%s8 + $0x78] sm:$0xff]
    %v768 = vld [vmem:[%s8 + $0x80] sm:$0xff]
    %v769 = vld [vmem:[%s8 + $0x88] sm:$0xff]
    %v770 = vld [vmem:[%s8 + $0x90] sm:$0xff]
    %v771 = vld [vmem:[%s8 + $0x98] sm:$0xff]
    %v772 = vld [vmem:[%s8 + $0xa0] sm:$0xff]
    %v773 = vld [vmem:[%s8 + $0xa8] sm:$0xff]
    %v774 = vld [vmem:[%s8 + $0xb0] sm:$0xff]
    %v775 = vld [vmem:[%s8 + $0xb8] sm:$0xff]
    %v776 = vld [vmem:[%s8 + $0xc0] sm:$0xff]
    %v777 = vld [vmem:[%s8 + $0xc8] sm:$0xff]
    %v778 = vld [vmem:[%s8 + $0xd0] sm:$0xff]
    %v779 = vld [vmem:[%s8 + $0xd8] sm:$0xff]
    %v780 = vld [vmem:[%s8 + $0xe0] sm:$0xff]
    %v781 = vld [vmem:[%s8 + $0xe8] sm:$0xff]
    %v782 = vld [vmem:[%s8 + $0xf0] sm:$0xff]
    %v783 = vld [vmem:[%s8 + $0xf8] sm:$0xff]
    %v784 = vld [vmem:[%s9] sm:$0x1]
    %v786 = vlaneseq
    %v787 = vshrl.u32 %v786, 7
    %v788 = vsub.s32 0, %v787
    %v789 = vrot.slane %v784, %v788
    %791 = vmatprep.subr.mxu0 0.0
    %792 = vmatpush1.msra.mxu0 %v767
    %793 = vmatprep.subr.mxu0 0.0
    %794 = vmatpush1.msra.mxu0 %v766
    %795 = vmatprep.subr.mxu0 0.0
    %796 = vmatpush1.msra.mxu0 %v765
    %797 = vmatprep.subr.mxu0 0.0
    %798 = vmatpush1.msra.mxu0 %v764
    %799 = vmatprep.subr.mxu0 0.0
    %800 = vmatpush1.msra.mxu0 %v763
    %801 = vmatprep.subr.mxu0 0.0
    %802 = vmatpush1.msra.mxu0 %v762
    %803 = vmatprep.subr.mxu0 0.0
    %804 = vmatpush1.msra.mxu0 %v761
    %805 = vmatprep.subr.mxu0 0.0
    %806 = vmatpush1.msra.mxu0 %v760
    %807 = vmatprep.subr.mxu0 0.0
    %808 = vmatpush1.msra.mxu0 %v759
    %809 = vmatprep.subr.mxu0 0.0
    %810 = vmatpush1.msra.mxu0 %v758
    %811 = vmatprep.subr.mxu0 0.0
    %812 = vmatpush1.msra.mxu0 %v757
    %813 = vmatprep.subr.mxu0 0.0
    %814 = vmatpush1.msra.mxu0 %v756
    %815 = vmatprep.subr.mxu0 0.0
    %816 = vmatpush1.msra.mxu0 %v755
    %817 = vmatprep.subr.mxu0 0.0
    %818 = vmatpush1.msra.mxu0 %v754
    %819 = vmatprep.subr.mxu0 0.0
    %820 = vmatpush1.msra.mxu0 %v753
    %821 = vmatprep.subr.mxu0 0.0
    %822 = vmatpush1.msra.mxu0 %v752
    %823 = vmatprep.subr.mxu0 0.0
    %824 = vmatpush2.msra.mxu0 %v783
    %825 = vmatprep.subr.mxu0 0.0
    %826 = vmatpush2.msra.mxu0 %v782
    %827 = vmatprep.subr.mxu0 0.0
    %828 = vmatpush2.msra.mxu0 %v781
    %829 = vmatprep.subr.mxu0 0.0
    %830 = vmatpush2.msra.mxu0 %v780
    %831 = vmatprep.subr.mxu0 0.0
    %832 = vmatpush2.msra.mxu0 %v779
    %833 = vmatprep.subr.mxu0 0.0
    %834 = vmatpush2.msra.mxu0 %v778
    %835 = vmatprep.subr.mxu0 0.0
    %836 = vmatpush2.msra.mxu0 %v777
    %837 = vmatprep.subr.mxu0 0.0
    %838 = vmatpush2.msra.mxu0 %v776
    %839 = vmatprep.subr.mxu0 0.0
    %840 = vmatpush2.msra.mxu0 %v775
    %841 = vmatprep.subr.mxu0 0.0
    %842 = vmatpush2.msra.mxu0 %v774
    %843 = vmatprep.subr.mxu0 0.0
    %844 = vmatpush2.msra.mxu0 %v773
    %845 = vmatprep.subr.mxu0 0.0
    %846 = vmatpush2.msra.mxu0 %v772
    %847 = vmatprep.subr.mxu0 0.0
    %848 = vmatpush2.msra.mxu0 %v771
    %849 = vmatprep.subr.mxu0 0.0
    %850 = vmatpush2.msra.mxu0 %v770
    %851 = vmatprep.subr.mxu0 0.0
    %852 = vmatpush2.msra.mxu0 %v769
    %853 = vmatprep.subr.mxu0 0.0
    %854 = vmatpush2.msra.mxu0 %v768
    %855 = vmatprep.mubr.f32.mxu0 %v751
    %856 = vmatmul.mubr.f32.gmra.mxu0 %v750
    %v857 = vpop.f32.mrf.mxu0
    %v858 = vadd.f32 %v789, %v857
    %v859 = vpop.f32.mrf.mxu0
    %860 = vdwg.mxu0
    %861 = vst [vmem:[#allocation5] sm:$0x3] %v858
    // Predicated region
    $region46: #{dqn_full_forward.1} parent=1 // pred_check
      _
    $region47: #{dqn_full_forward.1} parent=1 // pred_check_branch
      %863 = sbr.rel (0) target = $region49
    $region48: #{dqn_full_forward.1} parent=1 // pred_region
      %s865 = ssub.s32 32, 32
      %866 = vsyncadd [#allocation4], %s865
      %s868 = sshll.u32 [#allocation5], 4
      %s869 = int_to_ptr.vmem [resolvable:$true] %s868
      %871 = dma.vmem_to_hbm [thread:$0]  %s869, 32, %s10, [#allocation4]
    $region49: #{dqn_full_forward.1} parent=1 // pred_fallthru
      _
    // Predicated region
    $region50: #{dqn_full_forward.1} parent=1 // pred_check
      _
    $region51: #{dqn_full_forward.1} parent=1 // pred_check_branch
      %873 = sbr.rel (0) target = $region53
    $region52: #{dqn_full_forward.1} parent=1 // pred_region
      %874 = dma.done [#allocation4], 32
    $region53: #{dqn_full_forward.1} parent=1 // pred_fallthru
      _
    %875 = vsyncpa [#allocation3], 1
    %876 = vsyncpa [#allocation4], 1

</llo_original>
